<compile_context>
chip_gen: v7x
topology: tpu7x:2x2x1
jax: 0.10.0
libtpu: 0.0.40
codegen_flags: <defaults>
</compile_context>

<pallas_src>
import jax
import jax.numpy as jnp
import numpy as np
from jax import lax
from jax.experimental import pallas as pl
from jax.experimental.pallas import tpu as pltpu


def _round_up(n, m):
    return ((n + m - 1) // m) * m


def _choose_tiling(B, tile_b):
    """Pad B to a multiple of 128 lanes and pick a tile that divides it exactly."""
    Bp = _round_up(max(B, 1), 128)
    units = Bp // 128
    max_units = max(1, min(tile_b // 128, units))
    # Keep >= 2 grid steps for larger batches so the "parallel" batch axis can
    # be sharded across TensorCores (v7x has 2 TCs/chip); harmless elsewhere.
    if units >= 8:
        max_units = max(1, min(max_units, units // 2))
    t_units = 1
    for u in range(1, max_units + 1):
        if units % u == 0:
            t_units = u
    return Bp, t_units * 128


def special_adversary_kernel(beta_ref, b2_ref, xa_ref, w1a_ref, w2p_ref, o_ref):
    # beta_ref, b2_ref: SMEM (1,)
    # xa_ref:  VMEM (8, TB)   augmented feature-major tile (see module docstring)
    # w1a_ref: VMEM (H, 8)    [ w1.T | 0-pad | b1 | 0 ]   (x0 row has zero weight)
    # w2p_ref: VMEM (8, H)    row 0 = w2.T, rows 1..7 = 0
    # o_ref:   VMEM (1, TB)   lane-dense output tile
    xa = xa_ref[...]                                   # (8, TB)
    ka = xa.shape[0]

    # Layer 1 on the MXU; b1 folded via the ones row, x0 row weighted by zero.
    h = jnp.dot(w1a_ref[...], xa,
                preferred_element_type=jnp.float32,
                precision=lax.Precision.HIGHEST)       # (H, TB)
    h = jnp.maximum(h, 0.0)                            # ReLU (VPU)

    # Layer 2 on the MXU (sublane-padded lhs -> aligned (8, TB) result).
    y = jnp.dot(w2p_ref[...], h,
                preferred_element_type=jnp.float32,
                precision=lax.Precision.HIGHEST)       # (8, TB), row 0 is real

    x0 = xa[ka - 1:ka, :]                              # special column row
    o_ref[...] = y[0:1, :] + b2_ref[0] + beta_ref[0] * x0


def special_adversary(x, w1, b1, w2, b2, beta, *, tile_b=8192):
    """forward(x) = MLP(x[:, 1:]) + beta * x[:, [0]].  Returns (B, 1) float32."""
    B, D = x.shape
    d_in, H = w1.shape
    assert D == d_in + 1

    KA = _round_up(d_in + 2, 8)          # features + ones + x0, padded to 8 sublanes
    Bp, tb = _choose_tiling(B, tile_b)
    grid = (Bp // tb,)

    # Wrapper-side layout plumbing (one fused XLA pass, outside the hot loop).
    xT = jnp.zeros((KA, Bp), dtype=jnp.float32)
    xT = xT.at[:d_in, :B].set(x[:, 1:].T.astype(jnp.float32))   # features
    xT = xT.at[KA - 2, :].set(1.0)                              # ones row (b1 fold)
    xT = xT.at[KA - 1, :B].set(x[:, 0].astype(jnp.float32))     # special column

    w1a = jnp.zeros((H, KA), dtype=jnp.float32)
    w1a = w1a.at[:, :d_in].set(w1.T.astype(jnp.float32))
    w1a = w1a.at[:, KA - 2].set(b1.reshape(H).astype(jnp.float32))

    w2p = jnp.zeros((8, H), dtype=jnp.float32)
    w2p = w2p.at[0, :].set(w2.reshape(H).astype(jnp.float32))

    b2s = b2.reshape(1).astype(jnp.float32)
    beta_s = beta.reshape(1).astype(jnp.float32)

    flops = 2 * Bp * H * (KA + 8) + 3 * Bp
    bytes_accessed = 4 * (KA * Bp + Bp + H * KA + 8 * H + 2)

    out = pl.pallas_call(
        special_adversary_kernel,
        out_shape=jax.ShapeDtypeStruct((1, Bp), jnp.float32),
        grid=grid,
        in_specs=[
            pl.BlockSpec(memory_space=pltpu.MemorySpace.SMEM),    # beta
            pl.BlockSpec(memory_space=pltpu.MemorySpace.SMEM),    # b2
            pl.BlockSpec((KA, tb), lambda i: (0, i)),             # xa (pipelined)
            pl.BlockSpec((H, KA), lambda i: (0, 0)),              # w1 aug (resident)
            pl.BlockSpec((8, H), lambda i: (0, 0)),               # w2 padded (resident)
        ],
        out_specs=pl.BlockSpec((1, tb), lambda i: (0, i)),        # lane-dense output
        compiler_params=pltpu.CompilerParams(
            dimension_semantics=("parallel",)),
        cost_estimate=pl.CostEstimate(
            flops=flops, transcendentals=0, bytes_accessed=bytes_accessed),
    )(beta_s, b2s, xT, w1a, w2p)

    return out[0, :B].reshape(B, 1)


if __name__ == "__main__":
    key = jax.random.PRNGKey(0)
    B, d_in, H = 8, 4, 32          # batch, adversary input dim, hidden width
    D = 1 + d_in                   # x has one extra "special" column in front

    kx, k1, k2, k3, k4 = jax.random.split(key, 5)
    x = jax.random.normal(kx, (B, D), dtype=jnp.float32)

    # Adversary parameters (Linear(d_in, H) -> ReLU -> Linear(H, 1)).
    w1 = 0.1 * jax.random.normal(k1, (d_in, H), dtype=jnp.float32)
    b1 = 0.1 * jax.random.normal(k2, (1, H), dtype=jnp.float32)
    w2 = 0.1 * jax.random.normal(k3, (H, 1), dtype=jnp.float32)
    b2 = 0.1 * jax.random.normal(k4, (1, 1), dtype=jnp.float32)

    # Module __init__ uses nn.Parameter(torch.zeros(1)); use a nonzero value so
    # the beta * x[:, [0]] path is exercised.
    beta = jnp.array([0.5], dtype=jnp.float32)

    out = special_adversary(x, w1, b1, w2, b2, beta)
    out = jax.block_until_ready(out)

    # Exact float64 NumPy reference of the same forward pass.
    xn = np.asarray(x, dtype=np.float64)
    w1n = np.asarray(w1, dtype=np.float64)
    b1n = np.asarray(b1, dtype=np.float64)
    w2n = np.asarray(w2, dtype=np.float64)
    b2n = np.asarray(b2, dtype=np.float64)
    ref = np.maximum(xn[:, 1:] @ w1n + b1n, 0.0) @ w2n + b2n + 0.5 * xn[:, 0:1]

    assert out.shape == (B, 1)
    np.testing.assert_allclose(np.asarray(out, dtype=np.float64), ref,
                               atol=1e-5, rtol=1e-5)
    print("KERNEL_OK")
</pallas_src>

<mosaic_0001>
module attributes {stable_mosaic.version = 11 : i64} {
  func.func @special_adversary_kernel(%arg0: i32, %arg1: memref<1xf32, #tpu.memory_space<smem>>, %arg2: memref<1xf32, #tpu.memory_space<smem>>, %arg3: memref<8x128xf32, #tpu.memory_space<vmem>>, %arg4: memref<32x8xf32, #tpu.memory_space<vmem>>, %arg5: memref<8x32xf32, #tpu.memory_space<vmem>>, %arg6: memref<1x128xf32, #tpu.memory_space<vmem>>) attributes {dimension_semantics = [#tpu.dimension_semantics<parallel>], iteration_bounds = array<i64: 1>, scalar_prefetch = 0 : i64, scratch_operands = 0 : i64, tpu.core_type = #tpu.core_type<tc>, window_params = [{transform_indices = @transform_0, window_bounds = array<i64: 1>}, {transform_indices = @transform_1, window_bounds = array<i64: 1>}, {transform_indices = @transform_2, window_bounds = array<i64: 8, 128>}, {pipeline_mode = #tpu.pipeline_mode<synchronous>, transform_indices = @transform_3, window_bounds = array<i64: 32, 8>}, {pipeline_mode = #tpu.pipeline_mode<synchronous>, transform_indices = @transform_4, window_bounds = array<i64: 8, 32>}, {transform_indices = @transform_5, window_bounds = array<i64: 1, 128>}]} {
    %c0 = arith.constant 0 : index
    %c0_0 = arith.constant 0 : index
    %0 = vector.load %arg3[%c0, %c0_0] : memref<8x128xf32, #tpu.memory_space<vmem>>, vector<8x128xf32>
    %c0_1 = arith.constant 0 : index
    %c0_2 = arith.constant 0 : index
    %1 = vector.load %arg4[%c0_1, %c0_2] : memref<32x8xf32, #tpu.memory_space<vmem>>, vector<32x8xf32>
    %cst = arith.constant dense<0.000000e+00> : vector<32x128xf32>
    %2 = tpu.matmul %1, %0, %cst {dimension_numbers = #tpu.dot_dimension_numbers<[1], [0], [0], [1], [0, 0, 1, 1], [], []>, precision = #tpu.contract_precision<fp32>} : vector<32x8xf32>, vector<8x128xf32>, vector<32x128xf32> -> vector<32x128xf32>
    %cst_3 = arith.constant 0.000000e+00 : f32
    %3 = vector.broadcast %cst_3 : f32 to vector<32x128xf32>
    %4 = arith.maximumf %2, %3 : vector<32x128xf32>
    %c0_4 = arith.constant 0 : index
    %c0_5 = arith.constant 0 : index
    %5 = vector.load %arg5[%c0_4, %c0_5] : memref<8x32xf32, #tpu.memory_space<vmem>>, vector<8x32xf32>
    %cst_6 = arith.constant dense<0.000000e+00> : vector<8x128xf32>
    %6 = tpu.matmul %5, %4, %cst_6 {dimension_numbers = #tpu.dot_dimension_numbers<[1], [0], [0], [1], [0, 0, 1, 1], [], []>, precision = #tpu.contract_precision<fp32>} : vector<8x32xf32>, vector<32x128xf32>, vector<8x128xf32> -> vector<8x128xf32>
    %7 = vector.extract_strided_slice %0 {offsets = [7, 0], sizes = [1, 128], strides = [1, 1]} : vector<8x128xf32> to vector<1x128xf32>
    %8 = vector.extract_strided_slice %6 {offsets = [0, 0], sizes = [1, 128], strides = [1, 1]} : vector<8x128xf32> to vector<1x128xf32>
    %c0_7 = arith.constant 0 : index
    %9 = memref.load %arg2[%c0_7] : memref<1xf32, #tpu.memory_space<smem>>
    %10 = vector.broadcast %9 : f32 to vector<1x128xf32>
    %11 = arith.addf %8, %10 : vector<1x128xf32>
    %c0_8 = arith.constant 0 : index
    %12 = memref.load %arg1[%c0_8] : memref<1xf32, #tpu.memory_space<smem>>
    %13 = vector.broadcast %12 : f32 to vector<1x128xf32>
    %14 = arith.mulf %13, %7 : vector<1x128xf32>
    %15 = arith.addf %11, %14 : vector<1x128xf32>
    %c0_9 = arith.constant 0 : index
    %c0_10 = arith.constant 0 : index
    %16 = vector.load %arg6[%c0_9, %c0_10] : memref<1x128xf32, #tpu.memory_space<vmem>>, vector<1x128xf32>
    tpu.vector_store %arg6[%c0_9, %c0_10], %15 {strides = array<i32>} : memref<1x128xf32, #tpu.memory_space<vmem>>, vector<1x128xf32>,
    return
  }
  func.func @transform_0(%arg0: i32) -> i32 {
    %c0_i32 = arith.constant 0 : i32
    %c0_i32_0 = arith.constant 0 : i32
    return %c0_i32 : i32
  }
  func.func @transform_1(%arg0: i32) -> i32 {
    %c0_i32 = arith.constant 0 : i32
    %c0_i32_0 = arith.constant 0 : i32
    return %c0_i32 : i32
  }
  func.func @transform_2(%arg0: i32) -> (i32, i32) {
    %c0_i32 = arith.constant 0 : i32
    %c0_i32_0 = arith.constant 0 : i32
    return %c0_i32, %arg0 : i32, i32
  }
  func.func @transform_3(%arg0: i32) -> (i32, i32) {
    %c0_i32 = arith.constant 0 : i32
    %c0_i32_0 = arith.constant 0 : i32
    %c0_i32_1 = arith.constant 0 : i32
    return %c0_i32, %c0_i32_0 : i32, i32
  }
  func.func @transform_4(%arg0: i32) -> (i32, i32) {
    %c0_i32 = arith.constant 0 : i32
    %c0_i32_0 = arith.constant 0 : i32
    %c0_i32_1 = arith.constant 0 : i32
    return %c0_i32, %c0_i32_0 : i32, i32
  }
  func.func @transform_5(%arg0: i32) -> (i32, i32) {
    %c0_i32 = arith.constant 0 : i32
    %c0_i32_0 = arith.constant 0 : i32
    return %c0_i32, %arg0 : i32, i32
  }
}

</mosaic_0001>

<llo_original>
// kernel: tpu_custom_call.1
$region0: #{tpu_custom_call.1}
  #allocation0 [shape = 'u32[]', space=smem, size = 0x4, offset = 0x4, fixed_abs, tag = 'smem constant byte address 0x4 - core index']
  #allocation1 [shape = 'u32[144,128]{1,0:T(1,128)}', space=vmem, size = 0x12000, scoped, tag = 'internal scratch']
  #allocation2 [shape = 'f32[1]{0:T(128)S(6)}', space=smem, size = 0x200, scoped, tag = 'scoped memory for tpu_custom_call.1']
  #allocation3 [shape = 'f32[1]{0:T(128)S(6)}', space=smem, size = 0x200, scoped, tag = 'scoped memory for tpu_custom_call.1']
  %s0 = inlined_call_operand.<no memory space> [shape: f32[1], index: 0, kind: input, shape index: {}]
  %s1 = inlined_call_operand.<no memory space> [shape: f32[1], index: 1, kind: input, shape index: {}]
  %s2 = inlined_call_operand.vmem [shape: f32[8,128], index: 2, kind: input, shape index: {}]
  %s3 = inlined_call_operand.vmem [shape: f32[32,8], index: 3, kind: input, shape index: {}]
  %s4 = inlined_call_operand.vmem [shape: f32[8,32], index: 4, kind: input, shape index: {}]
  %s5 = inlined_call_operand.hbm [shape: f32[1,128], index: 5, kind: output, shape index: {}]
  %s6 = sld [smem:[#allocation0]]
  $region30: #{tpu_custom_call.1} parent=0
    _
  %s8 = ssub.s32 1, %s6
  %s9 = scalar_select 0, %s8, %s6
  %10 = sst [smem:[#allocation2]] %s0
  %11 = sst [smem:[#allocation3]] %s1
  $region1: #{tpu_custom_call.1} parent=0
    #allocation4 [shape = 'u8[512]{0}', space=vmem, size = 0x400, scoped, tag = 'output window, operand 0, single buffered']
    #allocation5 [shape = 's32[1]{0}', space=sflag, size = 0x4, scoped, tag = 'scoped memory for tpu_custom_call.1']
    %12 = vsyncpa [#allocation5], 0
    // Predicated region
    $region2: #{tpu_custom_call.1} parent=1 // pred_check
      _
    $region3: #{tpu_custom_call.1} parent=1 // pred_check_branch
      %14 = sbr.rel (0) target = $region5
    $region4: #{tpu_custom_call.1} parent=1 // pred_region
      _
    $region5: #{tpu_custom_call.1} parent=1 // pred_fallthru
      _
    // Predicated region
    $region6: #{tpu_custom_call.1} parent=1 // pred_check
      _
    $region7: #{tpu_custom_call.1} parent=1 // pred_check_branch
      %16 = sbr.rel (0) target = $region9
    $region8: #{tpu_custom_call.1} parent=1 // pred_region
      _
    $region9: #{tpu_custom_call.1} parent=1 // pred_fallthru
      _
    // Predicated region
    $region10: #{tpu_custom_call.1} parent=1 // pred_check
      _
    $region11: #{tpu_custom_call.1} parent=1 // pred_check_branch
      %18 = sbr.rel (0) target = $region13
    $region12: #{tpu_custom_call.1} parent=1 // pred_region
      _
    $region13: #{tpu_custom_call.1} parent=1 // pred_fallthru
      _
    // Predicated region
    $region14: #{tpu_custom_call.1} parent=1 // pred_check
      _
    $region15: #{tpu_custom_call.1} parent=1 // pred_check_branch
      %20 = sbr.rel (0) target = $region17
    $region16: #{tpu_custom_call.1} parent=1 // pred_region
      _
    $region17: #{tpu_custom_call.1} parent=1 // pred_fallthru
      _
    // Predicated region
    $region18: #{tpu_custom_call.1} parent=1 // pred_check
      _
    $region19: #{tpu_custom_call.1} parent=1 // pred_check_branch
      %22 = sbr.rel (0) target = $region21
    $region20: #{tpu_custom_call.1} parent=1 // pred_region
      _
    $region21: #{tpu_custom_call.1} parent=1 // pred_fallthru
      _
    %v23 = vld [vmem:[%s2] sm:$0xff]
    %v24 = vld [vmem:[%s3] sm:$0xff]
    %v25 = vld [vmem:[%s3 + $0x8] sm:$0xff]
    %v26 = vld [vmem:[%s3 + $0x10] sm:$0xff]
    %v27 = vld [vmem:[%s3 + $0x18] sm:$0xff]
    %vm28 = vcmask 64512
    %v30 = vsel %vm28, %v24, 0
    %v33 = vsel %vm28, %v25, 0
    %v36 = vsel %vm28, %v26, 0
    %v39 = vsel %vm28, %v27, 0
    %41 = vmatprep.subr.mxu0 0.0
    %v42 = vand.u32 %v23, 4294901760
    %43 = vmatpush1.msra.mxu0 %v42
    %44 = vmatprep.subr.mxu0 0.0
    %45 = vmatpush1.msra.mxu0 0.0
    %46 = vmatprep.subr.mxu0 0.0
    %47 = vmatpush1.msra.mxu0 0.0
    %48 = vmatprep.subr.mxu0 0.0
    %49 = vmatpush1.msra.mxu0 0.0
    %50 = vmatprep.subr.mxu0 0.0
    %51 = vmatpush1.msra.mxu0 0.0
    %52 = vmatprep.subr.mxu0 0.0
    %53 = vmatpush1.msra.mxu0 0.0
    %54 = vmatprep.subr.mxu0 0.0
    %55 = vmatpush1.msra.mxu0 0.0
    %56 = vmatprep.subr.mxu0 0.0
    %57 = vmatpush1.msra.mxu0 0.0
    %58 = vmatprep.subr.mxu0 0.0
    %59 = vmatpush1.msra.mxu0 0.0
    %60 = vmatprep.subr.mxu0 0.0
    %61 = vmatpush1.msra.mxu0 0.0
    %62 = vmatprep.subr.mxu0 0.0
    %63 = vmatpush1.msra.mxu0 0.0
    %64 = vmatprep.subr.mxu0 0.0
    %65 = vmatpush1.msra.mxu0 0.0
    %66 = vmatprep.subr.mxu0 0.0
    %67 = vmatpush1.msra.mxu0 0.0
    %68 = vmatprep.subr.mxu0 0.0
    %69 = vmatpush1.msra.mxu0 0.0
    %70 = vmatprep.subr.mxu0 0.0
    %71 = vmatpush1.msra.mxu0 0.0
    %72 = vmatprep.subr.mxu0 0.0
    %73 = vmatpush1.msra.mxu0 0.0
    %74 = vmatprep.subr.mxu0 0.0
    %75 = vmatpush1.msra.mxu0 0.0
    %76 = vmatprep.subr.mxu0 0.0
    %77 = vmatpush1.msra.mxu0 0.0
    %78 = vmatprep.subr.mxu0 0.0
    %79 = vmatpush1.msra.mxu0 0.0
    %80 = vmatprep.subr.mxu0 0.0
    %81 = vmatpush1.msra.mxu0 0.0
    %82 = vmatprep.subr.mxu0 0.0
    %83 = vmatpush1.msra.mxu0 0.0
    %84 = vmatprep.subr.mxu0 0.0
    %85 = vmatpush1.msra.mxu0 0.0
    %86 = vmatprep.subr.mxu0 0.0
    %87 = vmatpush1.msra.mxu0 0.0
    %88 = vmatprep.subr.mxu0 0.0
    %89 = vmatpush1.msra.mxu0 0.0
    %90 = vmatprep.subr.mxu0 0.0
    %91 = vmatpush1.msra.mxu0 0.0
    %92 = vmatprep.subr.mxu0 0.0
    %93 = vmatpush1.msra.mxu0 0.0
    %94 = vmatprep.subr.mxu0 0.0
    %95 = vmatpush1.msra.mxu0 0.0
    %96 = vmatprep.subr.mxu0 0.0
    %97 = vmatpush1.msra.mxu0 0.0
    %98 = vmatprep.subr.mxu0 0.0
    %99 = vmatpush1.msra.mxu0 0.0
    %100 = vmatprep.subr.mxu0 0.0
    %101 = vmatpush1.msra.mxu0 0.0
    %102 = vmatprep.subr.mxu0 0.0
    %103 = vmatpush1.msra.mxu0 0.0
    %104 = vmatprep.subr.mxu0 0.0
    %105 = vmatpush1.msra.mxu0 0.0
    %106 = vmatprep.mubr.f32.mxu0 0.0
    %v107 = vand.u32 %v30, 4294901760
    %v108 = vsub.f32 %v30, %v107
    %v109 = vand.u32 %v108, 4294901760
    %v110 = vsub.f32 %v108, %v109
    %v111 = vand.u32 %v110, 4294901760
    %112 = vmatmul.mubr.f32.gmra.mrb[0].mxu0 %v111
    %v113 = vpop.f32.mrb[0].mxu0
    %v114 = vadd.f32 0.0, %v113
    %v115 = vpop.f32.mrb[0].mxu0
    %116 = vmatprep.mubr.f32.mxu0 0.0
    %v117 = vand.u32 %v33, 4294901760
    %v118 = vsub.f32 %v33, %v117
    %v119 = vand.u32 %v118, 4294901760
    %v120 = vsub.f32 %v118, %v119
    %v121 = vand.u32 %v120, 4294901760
    %122 = vmatmul.mubr.f32.gmra.mrb[0].mxu0 %v121
    %v123 = vpop.f32.mrb[0].mxu0
    %v124 = vadd.f32 0.0, %v123
    %v125 = vpop.f32.mrb[0].mxu0
    %126 = vmatprep.mubr.f32.mxu0 0.0
    %v127 = vand.u32 %v36, 4294901760
    %v128 = vsub.f32 %v36, %v127
    %v129 = vand.u32 %v128, 4294901760
    %v130 = vsub.f32 %v128, %v129
    %v131 = vand.u32 %v130, 4294901760
    %132 = vmatmul.mubr.f32.gmra.mrb[0].mxu0 %v131
    %v133 = vpop.f32.mrb[0].mxu0
    %v134 = vadd.f32 0.0, %v133
    %v135 = vpop.f32.mrb[0].mxu0
    %136 = vmatprep.mubr.f32.mxu0 0.0
    %v137 = vand.u32 %v39, 4294901760
    %v138 = vsub.f32 %v39, %v137
    %v139 = vand.u32 %v138, 4294901760
    %v140 = vsub.f32 %v138, %v139
    %v141 = vand.u32 %v140, 4294901760
    %142 = vmatmul.mubr.f32.gmra.mrb[0].mxu0 %v141
    %v143 = vpop.f32.mrb[0].mxu0
    %v144 = vadd.f32 0.0, %v143
    %v145 = vpop.f32.mrb[0].mxu0
    %146 = vdwg.mxu0
    %147 = vmatprep.subr.mxu0 0.0
    %v148 = vand.u32 %v23, 4294901760
    %v149 = vsub.f32 %v23, %v148
    %v150 = vand.u32 %v149, 4294901760
    %v151 = vsub.f32 %v149, %v150
    %v152 = vand.u32 %v151, 4294901760
    %153 = vmatpush1.msra.mxu0 %v152
    %154 = vmatprep.subr.mxu0 0.0
    %155 = vmatpush1.msra.mxu0 0.0
    %156 = vmatprep.subr.mxu0 0.0
    %157 = vmatpush1.msra.mxu0 0.0
    %158 = vmatprep.subr.mxu0 0.0
    %159 = vmatpush1.msra.mxu0 0.0
    %160 = vmatprep.subr.mxu0 0.0
    %161 = vmatpush1.msra.mxu0 0.0
    %162 = vmatprep.subr.mxu0 0.0
    %163 = vmatpush1.msra.mxu0 0.0
    %164 = vmatprep.subr.mxu0 0.0
    %165 = vmatpush1.msra.mxu0 0.0
    %166 = vmatprep.subr.mxu0 0.0
    %167 = vmatpush1.msra.mxu0 0.0
    %168 = vmatprep.subr.mxu0 0.0
    %169 = vmatpush1.msra.mxu0 0.0
    %170 = vmatprep.subr.mxu0 0.0
    %171 = vmatpush1.msra.mxu0 0.0
    %172 = vmatprep.subr.mxu0 0.0
    %173 = vmatpush1.msra.mxu0 0.0
    %174 = vmatprep.subr.mxu0 0.0
    %175 = vmatpush1.msra.mxu0 0.0
    %176 = vmatprep.subr.mxu0 0.0
    %177 = vmatpush1.msra.mxu0 0.0
    %178 = vmatprep.subr.mxu0 0.0
    %179 = vmatpush1.msra.mxu0 0.0
    %180 = vmatprep.subr.mxu0 0.0
    %181 = vmatpush1.msra.mxu0 0.0
    %182 = vmatprep.subr.mxu0 0.0
    %183 = vmatpush1.msra.mxu0 0.0
    %184 = vmatprep.subr.mxu0 0.0
    %185 = vmatpush1.msra.mxu0 0.0
    %186 = vmatprep.subr.mxu0 0.0
    %187 = vmatpush1.msra.mxu0 0.0
    %188 = vmatprep.subr.mxu0 0.0
    %189 = vmatpush1.msra.mxu0 0.0
    %190 = vmatprep.subr.mxu0 0.0
    %191 = vmatpush1.msra.mxu0 0.0
    %192 = vmatprep.subr.mxu0 0.0
    %193 = vmatpush1.msra.mxu0 0.0
    %194 = vmatprep.subr.mxu0 0.0
    %195 = vmatpush1.msra.mxu0 0.0
    %196 = vmatprep.subr.mxu0 0.0
    %197 = vmatpush1.msra.mxu0 0.0
    %198 = vmatprep.subr.mxu0 0.0
    %199 = vmatpush1.msra.mxu0 0.0
    %200 = vmatprep.subr.mxu0 0.0
    %201 = vmatpush1.msra.mxu0 0.0
    %202 = vmatprep.subr.mxu0 0.0
    %203 = vmatpush1.msra.mxu0 0.0
    %204 = vmatprep.subr.mxu0 0.0
    %205 = vmatpush1.msra.mxu0 0.0
    %206 = vmatprep.subr.mxu0 0.0
    %207 = vmatpush1.msra.mxu0 0.0
    %208 = vmatprep.subr.mxu0 0.0
    %209 = vmatpush1.msra.mxu0 0.0
    %210 = vmatprep.subr.mxu0 0.0
    %211 = vmatpush1.msra.mxu0 0.0
    %212 = vmatprep.subr.mxu0 0.0
    %213 = vmatpush1.msra.mxu0 0.0
    %214 = vmatprep.subr.mxu0 0.0
    %215 = vmatpush1.msra.mxu0 0.0
    %216 = vmatprep.mubr.f32.mxu0 0.0
    %v217 = vand.u32 %v30, 4294901760
    %218 = vmatmul.mubr.f32.gmra.mrb[0].mxu0 %v217
    %v219 = vpop.f32.mrb[0].mxu0
    %v220 = vadd.f32 %v114, %v219
    %v221 = vpop.f32.mrb[0].mxu0
    %222 = vmatprep.mubr.f32.mxu0 0.0
    %v223 = vand.u32 %v33, 4294901760
    %224 = vmatmul.mubr.f32.gmra.mrb[0].mxu0 %v223
    %v225 = vpop.f32.mrb[0].mxu0
    %v226 = vadd.f32 %v124, %v225
    %v227 = vpop.f32.mrb[0].mxu0
    %228 = vmatprep.mubr.f32.mxu0 0.0
    %v229 = vand.u32 %v36, 4294901760
    %230 = vmatmul.mubr.f32.gmra.mrb[0].mxu0 %v229
    %v231 = vpop.f32.mrb[0].mxu0
    %v232 = vadd.f32 %v134, %v231
    %v233 = vpop.f32.mrb[0].mxu0
    %234 = vmatprep.mubr.f32.mxu0 0.0
    %v235 = vand.u32 %v39, 4294901760
    %236 = vmatmul.mubr.f32.gmra.mrb[0].mxu0 %v235
    %v237 = vpop.f32.mrb[0].mxu0
    %v238 = vadd.f32 %v144, %v237
    %v239 = vpop.f32.mrb[0].mxu0
    %240 = vdwg.mxu0
    %241 = vmatprep.subr.mxu0 0.0
    %v242 = vand.u32 %v23, 4294901760
    %v243 = vsub.f32 %v23, %v242
    %244 = vmatpush1.msra.mxu0 %v243
    %245 = vmatprep.subr.mxu0 0.0
    %246 = vmatpush1.msra.mxu0 0.0
    %247 = vmatprep.subr.mxu0 0.0
    %248 = vmatpush1.msra.mxu0 0.0
    %249 = vmatprep.subr.mxu0 0.0
    %250 = vmatpush1.msra.mxu0 0.0
    %251 = vmatprep.subr.mxu0 0.0
    %252 = vmatpush1.msra.mxu0 0.0
    %253 = vmatprep.subr.mxu0 0.0
    %254 = vmatpush1.msra.mxu0 0.0
    %255 = vmatprep.subr.mxu0 0.0
    %256 = vmatpush1.msra.mxu0 0.0
    %257 = vmatprep.subr.mxu0 0.0
    %258 = vmatpush1.msra.mxu0 0.0
    %259 = vmatprep.subr.mxu0 0.0
    %260 = vmatpush1.msra.mxu0 0.0
    %261 = vmatprep.subr.mxu0 0.0
    %262 = vmatpush1.msra.mxu0 0.0
    %263 = vmatprep.subr.mxu0 0.0
    %264 = vmatpush1.msra.mxu0 0.0
    %265 = vmatprep.subr.mxu0 0.0
    %266 = vmatpush1.msra.mxu0 0.0
    %267 = vmatprep.subr.mxu0 0.0
    %268 = vmatpush1.msra.mxu0 0.0
    %269 = vmatprep.subr.mxu0 0.0
    %270 = vmatpush1.msra.mxu0 0.0
    %271 = vmatprep.subr.mxu0 0.0
    %272 = vmatpush1.msra.mxu0 0.0
    %273 = vmatprep.subr.mxu0 0.0
    %274 = vmatpush1.msra.mxu0 0.0
    %275 = vmatprep.subr.mxu0 0.0
    %276 = vmatpush1.msra.mxu0 0.0
    %277 = vmatprep.subr.mxu0 0.0
    %278 = vmatpush1.msra.mxu0 0.0
    %279 = vmatprep.subr.mxu0 0.0
    %280 = vmatpush1.msra.mxu0 0.0
    %281 = vmatprep.subr.mxu0 0.0
    %282 = vmatpush1.msra.mxu0 0.0
    %283 = vmatprep.subr.mxu0 0.0
    %284 = vmatpush1.msra.mxu0 0.0
    %285 = vmatprep.subr.mxu0 0.0
    %286 = vmatpush1.msra.mxu0 0.0
    %287 = vmatprep.subr.mxu0 0.0
    %288 = vmatpush1.msra.mxu0 0.0
    %289 = vmatprep.subr.mxu0 0.0
    %290 = vmatpush1.msra.mxu0 0.0
    %291 = vmatprep.subr.mxu0 0.0
    %292 = vmatpush1.msra.mxu0 0.0
    %293 = vmatprep.subr.mxu0 0.0
    %294 = vmatpush1.msra.mxu0 0.0
    %295 = vmatprep.subr.mxu0 0.0
    %296 = vmatpush1.msra.mxu0 0.0
    %297 = vmatprep.subr.mxu0 0.0
    %298 = vmatpush1.msra.mxu0 0.0
    %299 = vmatprep.subr.mxu0 0.0
    %300 = vmatpush1.msra.mxu0 0.0
    %301 = vmatprep.subr.mxu0 0.0
    %302 = vmatpush1.msra.mxu0 0.0
    %303 = vmatprep.subr.mxu0 0.0
    %304 = vmatpush1.msra.mxu0 0.0
    %305 = vmatprep.subr.mxu0 0.0
    %306 = vmatpush1.msra.mxu0 0.0
    %307 = vmatprep.mubr.f32.mxu0 0.0
    %v308 = vand.u32 %v30, 4294901760
    %v309 = vsub.f32 %v30, %v308
    %310 = vmatmul.mubr.f32.gmra.mrb[0].mxu0 %v309
    %v311 = vpop.f32.mrb[0].mxu0
    %v312 = vadd.f32 %v220, %v311
    %v313 = vpop.f32.mrb[0].mxu0
    %314 = vmatprep.mubr.f32.mxu0 0.0
    %v315 = vand.u32 %v33, 4294901760
    %v316 = vsub.f32 %v33, %v315
    %317 = vmatmul.mubr.f32.gmra.mrb[0].mxu0 %v316
    %v318 = vpop.f32.mrb[0].mxu0
    %v319 = vadd.f32 %v226, %v318
    %v320 = vpop.f32.mrb[0].mxu0
    %321 = vmatprep.mubr.f32.mxu0 0.0
    %v322 = vand.u32 %v36, 4294901760
    %v323 = vsub.f32 %v36, %v322
    %324 = vmatmul.mubr.f32.gmra.mrb[0].mxu0 %v323
    %v325 = vpop.f32.mrb[0].mxu0
    %v326 = vadd.f32 %v232, %v325
    %v327 = vpop.f32.mrb[0].mxu0
    %328 = vmatprep.mubr.f32.mxu0 0.0
    %v329 = vand.u32 %v39, 4294901760
    %v330 = vsub.f32 %v39, %v329
    %331 = vmatmul.mubr.f32.gmra.mrb[0].mxu0 %v330
    %v332 = vpop.f32.mrb[0].mxu0
    %v333 = vadd.f32 %v238, %v332
    %v334 = vpop.f32.mrb[0].mxu0
    %335 = vdwg.mxu0
    %336 = vmatprep.subr.mxu0 0.0
    %v337 = vand.u32 %v23, 4294901760
    %338 = vmatpush1.msra.mxu0 %v337
    %339 = vmatprep.subr.mxu0 0.0
    %340 = vmatpush1.msra.mxu0 0.0
    %341 = vmatprep.subr.mxu0 0.0
    %342 = vmatpush1.msra.mxu0 0.0
    %343 = vmatprep.subr.mxu0 0.0
    %344 = vmatpush1.msra.mxu0 0.0
    %345 = vmatprep.subr.mxu0 0.0
    %346 = vmatpush1.msra.mxu0 0.0
    %347 = vmatprep.subr.mxu0 0.0
    %348 = vmatpush1.msra.mxu0 0.0
    %349 = vmatprep.subr.mxu0 0.0
    %350 = vmatpush1.msra.mxu0 0.0
    %351 = vmatprep.subr.mxu0 0.0
    %352 = vmatpush1.msra.mxu0 0.0
    %353 = vmatprep.subr.mxu0 0.0
    %354 = vmatpush1.msra.mxu0 0.0
    %355 = vmatprep.subr.mxu0 0.0
    %356 = vmatpush1.msra.mxu0 0.0
    %357 = vmatprep.subr.mxu0 0.0
    %358 = vmatpush1.msra.mxu0 0.0
    %359 = vmatprep.subr.mxu0 0.0
    %360 = vmatpush1.msra.mxu0 0.0
    %361 = vmatprep.subr.mxu0 0.0
    %362 = vmatpush1.msra.mxu0 0.0
    %363 = vmatprep.subr.mxu0 0.0
    %364 = vmatpush1.msra.mxu0 0.0
    %365 = vmatprep.subr.mxu0 0.0
    %366 = vmatpush1.msra.mxu0 0.0
    %367 = vmatprep.subr.mxu0 0.0
    %368 = vmatpush1.msra.mxu0 0.0
    %369 = vmatprep.subr.mxu0 0.0
    %370 = vmatpush1.msra.mxu0 0.0
    %371 = vmatprep.subr.mxu0 0.0
    %372 = vmatpush1.msra.mxu0 0.0
    %373 = vmatprep.subr.mxu0 0.0
    %374 = vmatpush1.msra.mxu0 0.0
    %375 = vmatprep.subr.mxu0 0.0
    %376 = vmatpush1.msra.mxu0 0.0
    %377 = vmatprep.subr.mxu0 0.0
    %378 = vmatpush1.msra.mxu0 0.0
    %379 = vmatprep.subr.mxu0 0.0
    %380 = vmatpush1.msra.mxu0 0.0
    %381 = vmatprep.subr.mxu0 0.0
    %382 = vmatpush1.msra.mxu0 0.0
    %383 = vmatprep.subr.mxu0 0.0
    %384 = vmatpush1.msra.mxu0 0.0
    %385 = vmatprep.subr.mxu0 0.0
    %386 = vmatpush1.msra.mxu0 0.0
    %387 = vmatprep.subr.mxu0 0.0
    %388 = vmatpush1.msra.mxu0 0.0
    %389 = vmatprep.subr.mxu0 0.0
    %390 = vmatpush1.msra.mxu0 0.0
    %391 = vmatprep.subr.mxu0 0.0
    %392 = vmatpush1.msra.mxu0 0.0
    %393 = vmatprep.subr.mxu0 0.0
    %394 = vmatpush1.msra.mxu0 0.0
    %395 = vmatprep.subr.mxu0 0.0
    %396 = vmatpush1.msra.mxu0 0.0
    %397 = vmatprep.subr.mxu0 0.0
    %398 = vmatpush1.msra.mxu0 0.0
    %399 = vmatprep.subr.mxu0 0.0
    %400 = vmatpush1.msra.mxu0 0.0
    %401 = vmatprep.mubr.f32.mxu0 0.0
    %v402 = vand.u32 %v30, 4294901760
    %v403 = vsub.f32 %v30, %v402
    %v404 = vand.u32 %v403, 4294901760
    %405 = vmatmul.mubr.f32.gmra.mrb[0].mxu0 %v404
    %v406 = vpop.f32.mrb[0].mxu0
    %v407 = vadd.f32 %v312, %v406
    %v408 = vpop.f32.mrb[0].mxu0
    %409 = vmatprep.mubr.f32.mxu0 0.0
    %v410 = vand.u32 %v33, 4294901760
    %v411 = vsub.f32 %v33, %v410
    %v412 = vand.u32 %v411, 4294901760
    %413 = vmatmul.mubr.f32.gmra.mrb[0].mxu0 %v412
    %v414 = vpop.f32.mrb[0].mxu0
    %v415 = vadd.f32 %v319, %v414
    %v416 = vpop.f32.mrb[0].mxu0
    %417 = vmatprep.mubr.f32.mxu0 0.0
    %v418 = vand.u32 %v36, 4294901760
    %v419 = vsub.f32 %v36, %v418
    %v420 = vand.u32 %v419, 4294901760
    %421 = vmatmul.mubr.f32.gmra.mrb[0].mxu0 %v420
    %v422 = vpop.f32.mrb[0].mxu0
    %v423 = vadd.f32 %v326, %v422
    %v424 = vpop.f32.mrb[0].mxu0
    %425 = vmatprep.mubr.f32.mxu0 0.0
    %v426 = vand.u32 %v39, 4294901760
    %v427 = vsub.f32 %v39, %v426
    %v428 = vand.u32 %v427, 4294901760
    %429 = vmatmul.mubr.f32.gmra.mrb[0].mxu0 %v428
    %v430 = vpop.f32.mrb[0].mxu0
    %v431 = vadd.f32 %v333, %v430
    %v432 = vpop.f32.mrb[0].mxu0
    %433 = vdwg.mxu0
    %434 = vmatprep.subr.mxu0 0.0
    %v435 = vand.u32 %v23, 4294901760
    %v436 = vsub.f32 %v23, %v435
    %v437 = vand.u32 %v436, 4294901760
    %438 = vmatpush1.msra.mxu0 %v437
    %439 = vmatprep.subr.mxu0 0.0
    %440 = vmatpush1.msra.mxu0 0.0
    %441 = vmatprep.subr.mxu0 0.0
    %442 = vmatpush1.msra.mxu0 0.0
    %443 = vmatprep.subr.mxu0 0.0
    %444 = vmatpush1.msra.mxu0 0.0
    %445 = vmatprep.subr.mxu0 0.0
    %446 = vmatpush1.msra.mxu0 0.0
    %447 = vmatprep.subr.mxu0 0.0
    %448 = vmatpush1.msra.mxu0 0.0
    %449 = vmatprep.subr.mxu0 0.0
    %450 = vmatpush1.msra.mxu0 0.0
    %451 = vmatprep.subr.mxu0 0.0
    %452 = vmatpush1.msra.mxu0 0.0
    %453 = vmatprep.subr.mxu0 0.0
    %454 = vmatpush1.msra.mxu0 0.0
    %455 = vmatprep.subr.mxu0 0.0
    %456 = vmatpush1.msra.mxu0 0.0
    %457 = vmatprep.subr.mxu0 0.0
    %458 = vmatpush1.msra.mxu0 0.0
    %459 = vmatprep.subr.mxu0 0.0
    %460 = vmatpush1.msra.mxu0 0.0
    %461 = vmatprep.subr.mxu0 0.0
    %462 = vmatpush1.msra.mxu0 0.0
    %463 = vmatprep.subr.mxu0 0.0
    %464 = vmatpush1.msra.mxu0 0.0
    %465 = vmatprep.subr.mxu0 0.0
    %466 = vmatpush1.msra.mxu0 0.0
    %467 = vmatprep.subr.mxu0 0.0
    %468 = vmatpush1.msra.mxu0 0.0
    %469 = vmatprep.subr.mxu0 0.0
    %470 = vmatpush1.msra.mxu0 0.0
    %471 = vmatprep.subr.mxu0 0.0
    %472 = vmatpush1.msra.mxu0 0.0
    %473 = vmatprep.subr.mxu0 0.0
    %474 = vmatpush1.msra.mxu0 0.0
    %475 = vmatprep.subr.mxu0 0.0
    %476 = vmatpush1.msra.mxu0 0.0
    %477 = vmatprep.subr.mxu0 0.0
    %478 = vmatpush1.msra.mxu0 0.0
    %479 = vmatprep.subr.mxu0 0.0
    %480 = vmatpush1.msra.mxu0 0.0
    %481 = vmatprep.subr.mxu0 0.0
    %482 = vmatpush1.msra.mxu0 0.0
    %483 = vmatprep.subr.mxu0 0.0
    %484 = vmatpush1.msra.mxu0 0.0
    %485 = vmatprep.subr.mxu0 0.0
    %486 = vmatpush1.msra.mxu0 0.0
    %487 = vmatprep.subr.mxu0 0.0
    %488 = vmatpush1.msra.mxu0 0.0
    %489 = vmatprep.subr.mxu0 0.0
    %490 = vmatpush1.msra.mxu0 0.0
    %491 = vmatprep.subr.mxu0 0.0
    %492 = vmatpush1.msra.mxu0 0.0
    %493 = vmatprep.subr.mxu0 0.0
    %494 = vmatpush1.msra.mxu0 0.0
    %495 = vmatprep.subr.mxu0 0.0
    %496 = vmatpush1.msra.mxu0 0.0
    %497 = vmatprep.subr.mxu0 0.0
    %498 = vmatpush1.msra.mxu0 0.0
    %499 = vmatprep.subr.mxu0 0.0
    %500 = vmatpush1.msra.mxu0 0.0
    %501 = vmatprep.mubr.f32.mxu0 0.0
    %v502 = vand.u32 %v30, 4294901760
    %503 = vmatmul.mubr.f32.gmra.mrb[0].mxu0 %v502
    %v504 = vpop.f32.mrb[0].mxu0
    %v505 = vadd.f32 %v407, %v504
    %v506 = vpop.f32.mrb[0].mxu0
    %507 = vmatprep.mubr.f32.mxu0 0.0
    %v508 = vand.u32 %v33, 4294901760
    %509 = vmatmul.mubr.f32.gmra.mrb[0].mxu0 %v508
    %v510 = vpop.f32.mrb[0].mxu0
    %v511 = vadd.f32 %v415, %v510
    %v512 = vpop.f32.mrb[0].mxu0
    %513 = vmatprep.mubr.f32.mxu0 0.0
    %v514 = vand.u32 %v36, 4294901760
    %515 = vmatmul.mubr.f32.gmra.mrb[0].mxu0 %v514
    %v516 = vpop.f32.mrb[0].mxu0
    %v517 = vadd.f32 %v423, %v516
    %v518 = vpop.f32.mrb[0].mxu0
    %519 = vmatprep.mubr.f32.mxu0 0.0
    %v520 = vand.u32 %v39, 4294901760
    %521 = vmatmul.mubr.f32.gmra.mrb[0].mxu0 %v520
    %v522 = vpop.f32.mrb[0].mxu0
    %v523 = vadd.f32 %v431, %v522
    %v524 = vpop.f32.mrb[0].mxu0
    %525 = vdwg.mxu0
    %526 = vmatprep.subr.mxu0 0.0
    %v527 = vand.u32 %v23, 4294901760
    %528 = vmatpush1.msra.mxu0 %v527
    %529 = vmatprep.subr.mxu0 0.0
    %530 = vmatpush1.msra.mxu0 0.0
    %531 = vmatprep.subr.mxu0 0.0
    %532 = vmatpush1.msra.mxu0 0.0
    %533 = vmatprep.subr.mxu0 0.0
    %534 = vmatpush1.msra.mxu0 0.0
    %535 = vmatprep.subr.mxu0 0.0
    %536 = vmatpush1.msra.mxu0 0.0
    %537 = vmatprep.subr.mxu0 0.0
    %538 = vmatpush1.msra.mxu0 0.0
    %539 = vmatprep.subr.mxu0 0.0
    %540 = vmatpush1.msra.mxu0 0.0
    %541 = vmatprep.subr.mxu0 0.0
    %542 = vmatpush1.msra.mxu0 0.0
    %543 = vmatprep.subr.mxu0 0.0
    %544 = vmatpush1.msra.mxu0 0.0
    %545 = vmatprep.subr.mxu0 0.0
    %546 = vmatpush1.msra.mxu0 0.0
    %547 = vmatprep.subr.mxu0 0.0
    %548 = vmatpush1.msra.mxu0 0.0
    %549 = vmatprep.subr.mxu0 0.0
    %550 = vmatpush1.msra.mxu0 0.0
    %551 = vmatprep.subr.mxu0 0.0
    %552 = vmatpush1.msra.mxu0 0.0
    %553 = vmatprep.subr.mxu0 0.0
    %554 = vmatpush1.msra.mxu0 0.0
    %555 = vmatprep.subr.mxu0 0.0
    %556 = vmatpush1.msra.mxu0 0.0
    %557 = vmatprep.subr.mxu0 0.0
    %558 = vmatpush1.msra.mxu0 0.0
    %559 = vmatprep.subr.mxu0 0.0
    %560 = vmatpush1.msra.mxu0 0.0
    %561 = vmatprep.subr.mxu0 0.0
    %562 = vmatpush1.msra.mxu0 0.0
    %563 = vmatprep.subr.mxu0 0.0
    %564 = vmatpush1.msra.mxu0 0.0
    %565 = vmatprep.subr.mxu0 0.0
    %566 = vmatpush1.msra.mxu0 0.0
    %567 = vmatprep.subr.mxu0 0.0
    %568 = vmatpush1.msra.mxu0 0.0
    %569 = vmatprep.subr.mxu0 0.0
    %570 = vmatpush1.msra.mxu0 0.0
    %571 = vmatprep.subr.mxu0 0.0
    %572 = vmatpush1.msra.mxu0 0.0
    %573 = vmatprep.subr.mxu0 0.0
    %574 = vmatpush1.msra.mxu0 0.0
    %575 = vmatprep.subr.mxu0 0.0
    %576 = vmatpush1.msra.mxu0 0.0
    %577 = vmatprep.subr.mxu0 0.0
    %578 = vmatpush1.msra.mxu0 0.0
    %579 = vmatprep.subr.mxu0 0.0
    %580 = vmatpush1.msra.mxu0 0.0
    %581 = vmatprep.subr.mxu0 0.0
    %582 = vmatpush1.msra.mxu0 0.0
    %583 = vmatprep.subr.mxu0 0.0
    %584 = vmatpush1.msra.mxu0 0.0
    %585 = vmatprep.subr.mxu0 0.0
    %586 = vmatpush1.msra.mxu0 0.0
    %587 = vmatprep.subr.mxu0 0.0
    %588 = vmatpush1.msra.mxu0 0.0
    %589 = vmatprep.subr.mxu0 0.0
    %590 = vmatpush1.msra.mxu0 0.0
    %591 = vmatprep.mubr.f32.mxu0 0.0
    %v592 = vand.u32 %v30, 4294901760
    %593 = vmatmul.mubr.f32.gmra.mrb[0].mxu0 %v592
    %v594 = vpop.f32.mrb[0].mxu0
    %v595 = vadd.f32 %v505, %v594
    %v596 = vpop.f32.mrb[0].mxu0
    %597 = vmatprep.mubr.f32.mxu0 0.0
    %v598 = vand.u32 %v33, 4294901760
    %599 = vmatmul.mubr.f32.gmra.mrb[0].mxu0 %v598
    %v600 = vpop.f32.mrb[0].mxu0
    %v601 = vadd.f32 %v511, %v600
    %v602 = vpop.f32.mrb[0].mxu0
    %603 = vmatprep.mubr.f32.mxu0 0.0
    %v604 = vand.u32 %v36, 4294901760
    %605 = vmatmul.mubr.f32.gmra.mrb[0].mxu0 %v604
    %v606 = vpop.f32.mrb[0].mxu0
    %v607 = vadd.f32 %v517, %v606
    %v608 = vpop.f32.mrb[0].mxu0
    %609 = vmatprep.mubr.f32.mxu0 0.0
    %v610 = vand.u32 %v39, 4294901760
    %611 = vmatmul.mubr.f32.gmra.mrb[0].mxu0 %v610
    %v612 = vpop.f32.mrb[0].mxu0
    %v613 = vadd.f32 %v523, %v612
    %v614 = vpop.f32.mrb[0].mxu0
    %615 = vdwg.mxu0
    %v616 = vmax.f32 %v595, 0.0
    %v617 = vmax.f32 %v601, 0.0
    %v618 = vmax.f32 %v607, 0.0
    %v619 = vmax.f32 %v613, 0.0
    %v620 = vld [vmem:[%s4] sm:$0xff]
    %vm621 = vcmask 261120
    %v623 = vsel %vm621, %v620, 0
    %625 = vmatprep.subr.mxu0 0.0
    %v626 = vand.u32 %v616, 4294901760
    %627 = vmatpush1.msra.mxu0 %v626
    %628 = vmatprep.subr.mxu0 0.0
    %v629 = vand.u32 %v617, 4294901760
    %630 = vmatpush1.msra.mxu0 %v629
    %631 = vmatprep.subr.mxu0 0.0
    %v632 = vand.u32 %v618, 4294901760
    %633 = vmatpush1.msra.mxu0 %v632
    %634 = vmatprep.subr.mxu0 0.0
    %v635 = vand.u32 %v619, 4294901760
    %636 = vmatpush1.msra.mxu0 %v635
    %637 = vmatprep.subr.mxu0 0.0
    %638 = vmatpush1.msra.mxu0 0.0
    %639 = vmatprep.subr.mxu0 0.0
    %640 = vmatpush1.msra.mxu0 0.0
    %641 = vmatprep.subr.mxu0 0.0
    %642 = vmatpush1.msra.mxu0 0.0
    %643 = vmatprep.subr.mxu0 0.0
    %644 = vmatpush1.msra.mxu0 0.0
    %645 = vmatprep.subr.mxu0 0.0
    %646 = vmatpush1.msra.mxu0 0.0
    %647 = vmatprep.subr.mxu0 0.0
    %648 = vmatpush1.msra.mxu0 0.0
    %649 = vmatprep.subr.mxu0 0.0
    %650 = vmatpush1.msra.mxu0 0.0
    %651 = vmatprep.subr.mxu0 0.0
    %652 = vmatpush1.msra.mxu0 0.0
    %653 = vmatprep.subr.mxu0 0.0
    %654 = vmatpush1.msra.mxu0 0.0
    %655 = vmatprep.subr.mxu0 0.0
    %656 = vmatpush1.msra.mxu0 0.0
    %657 = vmatprep.subr.mxu0 0.0
    %658 = vmatpush1.msra.mxu0 0.0
    %659 = vmatprep.subr.mxu0 0.0
    %660 = vmatpush1.msra.mxu0 0.0
    %661 = vmatprep.subr.mxu0 0.0
    %662 = vmatpush1.msra.mxu0 0.0
    %663 = vmatprep.subr.mxu0 0.0
    %664 = vmatpush1.msra.mxu0 0.0
    %665 = vmatprep.subr.mxu0 0.0
    %666 = vmatpush1.msra.mxu0 0.0
    %667 = vmatprep.subr.mxu0 0.0
    %668 = vmatpush1.msra.mxu0 0.0
    %669 = vmatprep.subr.mxu0 0.0
    %670 = vmatpush1.msra.mxu0 0.0
    %671 = vmatprep.subr.mxu0 0.0
    %672 = vmatpush1.msra.mxu0 0.0
    %673 = vmatprep.subr.mxu0 0.0
    %674 = vmatpush1.msra.mxu0 0.0
    %675 = vmatprep.subr.mxu0 0.0
    %676 = vmatpush1.msra.mxu0 0.0
    %677 = vmatprep.subr.mxu0 0.0
    %678 = vmatpush1.msra.mxu0 0.0
    %679 = vmatprep.subr.mxu0 0.0
    %680 = vmatpush1.msra.mxu0 0.0
    %681 = vmatprep.subr.mxu0 0.0
    %682 = vmatpush1.msra.mxu0 0.0
    %683 = vmatprep.subr.mxu0 0.0
    %684 = vmatpush1.msra.mxu0 0.0
    %685 = vmatprep.subr.mxu0 0.0
    %686 = vmatpush1.msra.mxu0 0.0
    %687 = vmatprep.subr.mxu0 0.0
    %688 = vmatpush1.msra.mxu0 0.0
    %689 = vmatprep.subr.mxu0 0.0
    %690 = vmatpush1.msra.mxu0 0.0
    %691 = vmatprep.subr.mxu0 0.0
    %692 = vmatpush1.msra.mxu0 0.0
    %693 = vmatprep.mubr.f32.mxu0 0.0
    %v694 = vand.u32 %v623, 4294901760
    %v695 = vsub.f32 %v623, %v694
    %v696 = vand.u32 %v695, 4294901760
    %v697 = vsub.f32 %v695, %v696
    %v698 = vand.u32 %v697, 4294901760
    %699 = vmatmul.mubr.f32.gmra.mrb[0].mxu0 %v698
    %v700 = vpop.f32.mrb[0].mxu0
    %v701 = vadd.f32 0.0, %v700
    %v702 = vpop.f32.mrb[0].mxu0
    %703 = vdwg.mxu0
    %704 = vmatprep.subr.mxu0 0.0
    %v705 = vand.u32 %v616, 4294901760
    %v706 = vsub.f32 %v616, %v705
    %v707 = vand.u32 %v706, 4294901760
    %v708 = vsub.f32 %v706, %v707
    %v709 = vand.u32 %v708, 4294901760
    %710 = vmatpush1.msra.mxu0 %v709
    %711 = vmatprep.subr.mxu0 0.0
    %v712 = vand.u32 %v617, 4294901760
    %v713 = vsub.f32 %v617, %v712
    %v714 = vand.u32 %v713, 4294901760
    %v715 = vsub.f32 %v713, %v714
    %v716 = vand.u32 %v715, 4294901760
    %717 = vmatpush1.msra.mxu0 %v716
    %718 = vmatprep.subr.mxu0 0.0
    %v719 = vand.u32 %v618, 4294901760
    %v720 = vsub.f32 %v618, %v719
    %v721 = vand.u32 %v720, 4294901760
    %v722 = vsub.f32 %v720, %v721
    %v723 = vand.u32 %v722, 4294901760
    %724 = vmatpush1.msra.mxu0 %v723
    %725 = vmatprep.subr.mxu0 0.0
    %v726 = vand.u32 %v619, 4294901760
    %v727 = vsub.f32 %v619, %v726
    %v728 = vand.u32 %v727, 4294901760
    %v729 = vsub.f32 %v727, %v728
    %v730 = vand.u32 %v729, 4294901760
    %731 = vmatpush1.msra.mxu0 %v730
    %732 = vmatprep.subr.mxu0 0.0
    %733 = vmatpush1.msra.mxu0 0.0
    %734 = vmatprep.subr.mxu0 0.0
    %735 = vmatpush1.msra.mxu0 0.0
    %736 = vmatprep.subr.mxu0 0.0
    %737 = vmatpush1.msra.mxu0 0.0
    %738 = vmatprep.subr.mxu0 0.0
    %739 = vmatpush1.msra.mxu0 0.0
    %740 = vmatprep.subr.mxu0 0.0
    %741 = vmatpush1.msra.mxu0 0.0
    %742 = vmatprep.subr.mxu0 0.0
    %743 = vmatpush1.msra.mxu0 0.0
    %744 = vmatprep.subr.mxu0 0.0
    %745 = vmatpush1.msra.mxu0 0.0
    %746 = vmatprep.subr.mxu0 0.0
    %747 = vmatpush1.msra.mxu0 0.0
    %748 = vmatprep.subr.mxu0 0.0
    %749 = vmatpush1.msra.mxu0 0.0
    %750 = vmatprep.subr.mxu0 0.0
    %751 = vmatpush1.msra.mxu0 0.0
    %752 = vmatprep.subr.mxu0 0.0
    %753 = vmatpush1.msra.mxu0 0.0
    %754 = vmatprep.subr.mxu0 0.0
    %755 = vmatpush1.msra.mxu0 0.0
    %756 = vmatprep.subr.mxu0 0.0
    %757 = vmatpush1.msra.mxu0 0.0
    %758 = vmatprep.subr.mxu0 0.0
    %759 = vmatpush1.msra.mxu0 0.0
    %760 = vmatprep.subr.mxu0 0.0
    %761 = vmatpush1.msra.mxu0 0.0
    %762 = vmatprep.subr.mxu0 0.0
    %763 = vmatpush1.msra.mxu0 0.0
    %764 = vmatprep.subr.mxu0 0.0
    %765 = vmatpush1.msra.mxu0 0.0
    %766 = vmatprep.subr.mxu0 0.0
    %767 = vmatpush1.msra.mxu0 0.0
    %768 = vmatprep.subr.mxu0 0.0
    %769 = vmatpush1.msra.mxu0 0.0
    %770 = vmatprep.subr.mxu0 0.0
    %771 = vmatpush1.msra.mxu0 0.0
    %772 = vmatprep.subr.mxu0 0.0
    %773 = vmatpush1.msra.mxu0 0.0
    %774 = vmatprep.subr.mxu0 0.0
    %775 = vmatpush1.msra.mxu0 0.0
    %776 = vmatprep.subr.mxu0 0.0
    %777 = vmatpush1.msra.mxu0 0.0
    %778 = vmatprep.subr.mxu0 0.0
    %779 = vmatpush1.msra.mxu0 0.0
    %780 = vmatprep.subr.mxu0 0.0
    %781 = vmatpush1.msra.mxu0 0.0
    %782 = vmatprep.subr.mxu0 0.0
    %783 = vmatpush1.msra.mxu0 0.0
    %784 = vmatprep.subr.mxu0 0.0
    %785 = vmatpush1.msra.mxu0 0.0
    %786 = vmatprep.subr.mxu0 0.0
    %787 = vmatpush1.msra.mxu0 0.0
    %788 = vmatprep.mubr.f32.mxu0 0.0
    %v789 = vand.u32 %v623, 4294901760
    %790 = vmatmul.mubr.f32.gmra.mrb[0].mxu0 %v789
    %v791 = vpop.f32.mrb[0].mxu0
    %v792 = vadd.f32 %v701, %v791
    %v793 = vpop.f32.mrb[0].mxu0
    %794 = vdwg.mxu0
    %795 = vmatprep.subr.mxu0 0.0
    %v796 = vand.u32 %v616, 4294901760
    %v797 = vsub.f32 %v616, %v796
    %798 = vmatpush1.msra.mxu0 %v797
    %799 = vmatprep.subr.mxu0 0.0
    %v800 = vand.u32 %v617, 4294901760
    %v801 = vsub.f32 %v617, %v800
    %802 = vmatpush1.msra.mxu0 %v801
    %803 = vmatprep.subr.mxu0 0.0
    %v804 = vand.u32 %v618, 4294901760
    %v805 = vsub.f32 %v618, %v804
    %806 = vmatpush1.msra.mxu0 %v805
    %807 = vmatprep.subr.mxu0 0.0
    %v808 = vand.u32 %v619, 4294901760
    %v809 = vsub.f32 %v619, %v808
    %810 = vmatpush1.msra.mxu0 %v809
    %811 = vmatprep.subr.mxu0 0.0
    %812 = vmatpush1.msra.mxu0 0.0
    %813 = vmatprep.subr.mxu0 0.0
    %814 = vmatpush1.msra.mxu0 0.0
    %815 = vmatprep.subr.mxu0 0.0
    %816 = vmatpush1.msra.mxu0 0.0
    %817 = vmatprep.subr.mxu0 0.0
    %818 = vmatpush1.msra.mxu0 0.0
    %819 = vmatprep.subr.mxu0 0.0
    %820 = vmatpush1.msra.mxu0 0.0
    %821 = vmatprep.subr.mxu0 0.0
    %822 = vmatpush1.msra.mxu0 0.0
    %823 = vmatprep.subr.mxu0 0.0
    %824 = vmatpush1.msra.mxu0 0.0
    %825 = vmatprep.subr.mxu0 0.0
    %826 = vmatpush1.msra.mxu0 0.0
    %827 = vmatprep.subr.mxu0 0.0
    %828 = vmatpush1.msra.mxu0 0.0
    %829 = vmatprep.subr.mxu0 0.0
    %830 = vmatpush1.msra.mxu0 0.0
    %831 = vmatprep.subr.mxu0 0.0
    %832 = vmatpush1.msra.mxu0 0.0
    %833 = vmatprep.subr.mxu0 0.0
    %834 = vmatpush1.msra.mxu0 0.0
    %835 = vmatprep.subr.mxu0 0.0
    %836 = vmatpush1.msra.mxu0 0.0
    %837 = vmatprep.subr.mxu0 0.0
    %838 = vmatpush1.msra.mxu0 0.0
    %839 = vmatprep.subr.mxu0 0.0
    %840 = vmatpush1.msra.mxu0 0.0
    %841 = vmatprep.subr.mxu0 0.0
    %842 = vmatpush1.msra.mxu0 0.0
    %843 = vmatprep.subr.mxu0 0.0
    %844 = vmatpush1.msra.mxu0 0.0
    %845 = vmatprep.subr.mxu0 0.0
    %846 = vmatpush1.msra.mxu0 0.0
    %847 = vmatprep.subr.mxu0 0.0
    %848 = vmatpush1.msra.mxu0 0.0
    %849 = vmatprep.subr.mxu0 0.0
    %850 = vmatpush1.msra.mxu0 0.0
    %851 = vmatprep.subr.mxu0 0.0
    %852 = vmatpush1.msra.mxu0 0.0
    %853 = vmatprep.subr.mxu0 0.0
    %854 = vmatpush1.msra.mxu0 0.0
    %855 = vmatprep.subr.mxu0 0.0
    %856 = vmatpush1.msra.mxu0 0.0
    %857 = vmatprep.subr.mxu0 0.0
    %858 = vmatpush1.msra.mxu0 0.0
    %859 = vmatprep.subr.mxu0 0.0
    %860 = vmatpush1.msra.mxu0 0.0
    %861 = vmatprep.subr.mxu0 0.0
    %862 = vmatpush1.msra.mxu0 0.0
    %863 = vmatprep.subr.mxu0 0.0
    %864 = vmatpush1.msra.mxu0 0.0
    %865 = vmatprep.subr.mxu0 0.0
    %866 = vmatpush1.msra.mxu0 0.0
    %867 = vmatprep.mubr.f32.mxu0 0.0
    %v868 = vand.u32 %v623, 4294901760
    %v869 = vsub.f32 %v623, %v868
    %870 = vmatmul.mubr.f32.gmra.mrb[0].mxu0 %v869
    %v871 = vpop.f32.mrb[0].mxu0
    %v872 = vadd.f32 %v792, %v871
    %v873 = vpop.f32.mrb[0].mxu0
    %874 = vdwg.mxu0
    %875 = vmatprep.subr.mxu0 0.0
    %v876 = vand.u32 %v616, 4294901760
    %877 = vmatpush1.msra.mxu0 %v876
    %878 = vmatprep.subr.mxu0 0.0
    %v879 = vand.u32 %v617, 4294901760
    %880 = vmatpush1.msra.mxu0 %v879
    %881 = vmatprep.subr.mxu0 0.0
    %v882 = vand.u32 %v618, 4294901760
    %883 = vmatpush1.msra.mxu0 %v882
    %884 = vmatprep.subr.mxu0 0.0
    %v885 = vand.u32 %v619, 4294901760
    %886 = vmatpush1.msra.mxu0 %v885
    %887 = vmatprep.subr.mxu0 0.0
    %888 = vmatpush1.msra.mxu0 0.0
    %889 = vmatprep.subr.mxu0 0.0
    %890 = vmatpush1.msra.mxu0 0.0
    %891 = vmatprep.subr.mxu0 0.0
    %892 = vmatpush1.msra.mxu0 0.0
    %893 = vmatprep.subr.mxu0 0.0
    %894 = vmatpush1.msra.mxu0 0.0
    %895 = vmatprep.subr.mxu0 0.0
    %896 = vmatpush1.msra.mxu0 0.0
    %897 = vmatprep.subr.mxu0 0.0
    %898 = vmatpush1.msra.mxu0 0.0
    %899 = vmatprep.subr.mxu0 0.0
    %900 = vmatpush1.msra.mxu0 0.0
    %901 = vmatprep.subr.mxu0 0.0
    %902 = vmatpush1.msra.mxu0 0.0
    %903 = vmatprep.subr.mxu0 0.0
    %904 = vmatpush1.msra.mxu0 0.0
    %905 = vmatprep.subr.mxu0 0.0
    %906 = vmatpush1.msra.mxu0 0.0
    %907 = vmatprep.subr.mxu0 0.0
    %908 = vmatpush1.msra.mxu0 0.0
    %909 = vmatprep.subr.mxu0 0.0
    %910 = vmatpush1.msra.mxu0 0.0
    %911 = vmatprep.subr.mxu0 0.0
    %912 = vmatpush1.msra.mxu0 0.0
    %913 = vmatprep.subr.mxu0 0.0
    %914 = vmatpush1.msra.mxu0 0.0
    %915 = vmatprep.subr.mxu0 0.0
    %916 = vmatpush1.msra.mxu0 0.0
    %917 = vmatprep.subr.mxu0 0.0
    %918 = vmatpush1.msra.mxu0 0.0
    %919 = vmatprep.subr.mxu0 0.0
    %920 = vmatpush1.msra.mxu0 0.0
    %921 = vmatprep.subr.mxu0 0.0
    %922 = vmatpush1.msra.mxu0 0.0
    %923 = vmatprep.subr.mxu0 0.0
    %924 = vmatpush1.msra.mxu0 0.0
    %925 = vmatprep.subr.mxu0 0.0
    %926 = vmatpush1.msra.mxu0 0.0
    %927 = vmatprep.subr.mxu0 0.0
    %928 = vmatpush1.msra.mxu0 0.0
    %929 = vmatprep.subr.mxu0 0.0
    %930 = vmatpush1.msra.mxu0 0.0
    %931 = vmatprep.subr.mxu0 0.0
    %932 = vmatpush1.msra.mxu0 0.0
    %933 = vmatprep.subr.mxu0 0.0
    %934 = vmatpush1.msra.mxu0 0.0
    %935 = vmatprep.subr.mxu0 0.0
    %936 = vmatpush1.msra.mxu0 0.0
    %937 = vmatprep.subr.mxu0 0.0
    %938 = vmatpush1.msra.mxu0 0.0
    %939 = vmatprep.subr.mxu0 0.0
    %940 = vmatpush1.msra.mxu0 0.0
    %941 = vmatprep.subr.mxu0 0.0
    %942 = vmatpush1.msra.mxu0 0.0
    %943 = vmatprep.mubr.f32.mxu0 0.0
    %v944 = vand.u32 %v623, 4294901760
    %v945 = vsub.f32 %v623, %v944
    %v946 = vand.u32 %v945, 4294901760
    %947 = vmatmul.mubr.f32.gmra.mrb[0].mxu0 %v946
    %v948 = vpop.f32.mrb[0].mxu0
    %v949 = vadd.f32 %v872, %v948
    %v950 = vpop.f32.mrb[0].mxu0
    %951 = vdwg.mxu0
    %952 = vmatprep.subr.mxu0 0.0
    %v953 = vand.u32 %v616, 4294901760
    %v954 = vsub.f32 %v616, %v953
    %v955 = vand.u32 %v954, 4294901760
    %956 = vmatpush1.msra.mxu0 %v955
    %957 = vmatprep.subr.mxu0 0.0
    %v958 = vand.u32 %v617, 4294901760
    %v959 = vsub.f32 %v617, %v958
    %v960 = vand.u32 %v959, 4294901760
    %961 = vmatpush1.msra.mxu0 %v960
    %962 = vmatprep.subr.mxu0 0.0
    %v963 = vand.u32 %v618, 4294901760
    %v964 = vsub.f32 %v618, %v963
    %v965 = vand.u32 %v964, 4294901760
    %966 = vmatpush1.msra.mxu0 %v965
    %967 = vmatprep.subr.mxu0 0.0
    %v968 = vand.u32 %v619, 4294901760
    %v969 = vsub.f32 %v619, %v968
    %v970 = vand.u32 %v969, 4294901760
    %971 = vmatpush1.msra.mxu0 %v970
    %972 = vmatprep.subr.mxu0 0.0
    %973 = vmatpush1.msra.mxu0 0.0
    %974 = vmatprep.subr.mxu0 0.0
    %975 = vmatpush1.msra.mxu0 0.0
    %976 = vmatprep.subr.mxu0 0.0
    %977 = vmatpush1.msra.mxu0 0.0
    %978 = vmatprep.subr.mxu0 0.0
    %979 = vmatpush1.msra.mxu0 0.0
    %980 = vmatprep.subr.mxu0 0.0
    %981 = vmatpush1.msra.mxu0 0.0
    %982 = vmatprep.subr.mxu0 0.0
    %983 = vmatpush1.msra.mxu0 0.0
    %984 = vmatprep.subr.mxu0 0.0
    %985 = vmatpush1.msra.mxu0 0.0
    %986 = vmatprep.subr.mxu0 0.0
    %987 = vmatpush1.msra.mxu0 0.0
    %988 = vmatprep.subr.mxu0 0.0
    %989 = vmatpush1.msra.mxu0 0.0
    %990 = vmatprep.subr.mxu0 0.0
    %991 = vmatpush1.msra.mxu0 0.0
    %992 = vmatprep.subr.mxu0 0.0
    %993 = vmatpush1.msra.mxu0 0.0
    %994 = vmatprep.subr.mxu0 0.0
    %995 = vmatpush1.msra.mxu0 0.0
    %996 = vmatprep.subr.mxu0 0.0
    %997 = vmatpush1.msra.mxu0 0.0
    %998 = vmatprep.subr.mxu0 0.0
    %999 = vmatpush1.msra.mxu0 0.0
    %1000 = vmatprep.subr.mxu0 0.0
    %1001 = vmatpush1.msra.mxu0 0.0
    %1002 = vmatprep.subr.mxu0 0.0
    %1003 = vmatpush1.msra.mxu0 0.0
    %1004 = vmatprep.subr.mxu0 0.0
    %1005 = vmatpush1.msra.mxu0 0.0
    %1006 = vmatprep.subr.mxu0 0.0
    %1007 = vmatpush1.msra.mxu0 0.0
    %1008 = vmatprep.subr.mxu0 0.0
    %1009 = vmatpush1.msra.mxu0 0.0
    %1010 = vmatprep.subr.mxu0 0.0
    %1011 = vmatpush1.msra.mxu0 0.0
    %1012 = vmatprep.subr.mxu0 0.0
    %1013 = vmatpush1.msra.mxu0 0.0
    %1014 = vmatprep.subr.mxu0 0.0
    %1015 = vmatpush1.msra.mxu0 0.0
    %1016 = vmatprep.subr.mxu0 0.0
    %1017 = vmatpush1.msra.mxu0 0.0
    %1018 = vmatprep.subr.mxu0 0.0
    %1019 = vmatpush1.msra.mxu0 0.0
    %1020 = vmatprep.subr.mxu0 0.0
    %1021 = vmatpush1.msra.mxu0 0.0
    %1022 = vmatprep.subr.mxu0 0.0
    %1023 = vmatpush1.msra.mxu0 0.0
    %1024 = vmatprep.subr.mxu0 0.0
    %1025 = vmatpush1.msra.mxu0 0.0
    %1026 = vmatprep.subr.mxu0 0.0
    %1027 = vmatpush1.msra.mxu0 0.0
    %1028 = vmatprep.mubr.f32.mxu0 0.0
    %v1029 = vand.u32 %v623, 4294901760
    %1030 = vmatmul.mubr.f32.gmra.mrb[0].mxu0 %v1029
    %v1031 = vpop.f32.mrb[0].mxu0
    %v1032 = vadd.f32 %v949, %v1031
    %v1033 = vpop.f32.mrb[0].mxu0
    %1034 = vdwg.mxu0
    %1035 = vmatprep.subr.mxu0 0.0
    %v1036 = vand.u32 %v616, 4294901760
    %1037 = vmatpush1.msra.mxu0 %v1036
    %1038 = vmatprep.subr.mxu0 0.0
    %v1039 = vand.u32 %v617, 4294901760
    %1040 = vmatpush1.msra.mxu0 %v1039
    %1041 = vmatprep.subr.mxu0 0.0
    %v1042 = vand.u32 %v618, 4294901760
    %1043 = vmatpush1.msra.mxu0 %v1042
    %1044 = vmatprep.subr.mxu0 0.0
    %v1045 = vand.u32 %v619, 4294901760
    %1046 = vmatpush1.msra.mxu0 %v1045
    %1047 = vmatprep.subr.mxu0 0.0
    %1048 = vmatpush1.msra.mxu0 0.0
    %1049 = vmatprep.subr.mxu0 0.0
    %1050 = vmatpush1.msra.mxu0 0.0
    %1051 = vmatprep.subr.mxu0 0.0
    %1052 = vmatpush1.msra.mxu0 0.0
    %1053 = vmatprep.subr.mxu0 0.0
    %1054 = vmatpush1.msra.mxu0 0.0
    %1055 = vmatprep.subr.mxu0 0.0
    %1056 = vmatpush1.msra.mxu0 0.0
    %1057 = vmatprep.subr.mxu0 0.0
    %1058 = vmatpush1.msra.mxu0 0.0
    %1059 = vmatprep.subr.mxu0 0.0
    %1060 = vmatpush1.msra.mxu0 0.0
    %1061 = vmatprep.subr.mxu0 0.0
    %1062 = vmatpush1.msra.mxu0 0.0
    %1063 = vmatprep.subr.mxu0 0.0
    %1064 = vmatpush1.msra.mxu0 0.0
    %1065 = vmatprep.subr.mxu0 0.0
    %1066 = vmatpush1.msra.mxu0 0.0
    %1067 = vmatprep.subr.mxu0 0.0
    %1068 = vmatpush1.msra.mxu0 0.0
    %1069 = vmatprep.subr.mxu0 0.0
    %1070 = vmatpush1.msra.mxu0 0.0
    %1071 = vmatprep.subr.mxu0 0.0
    %1072 = vmatpush1.msra.mxu0 0.0
    %1073 = vmatprep.subr.mxu0 0.0
    %1074 = vmatpush1.msra.mxu0 0.0
    %1075 = vmatprep.subr.mxu0 0.0
    %1076 = vmatpush1.msra.mxu0 0.0
    %1077 = vmatprep.subr.mxu0 0.0
    %1078 = vmatpush1.msra.mxu0 0.0
    %1079 = vmatprep.subr.mxu0 0.0
    %1080 = vmatpush1.msra.mxu0 0.0
    %1081 = vmatprep.subr.mxu0 0.0
    %1082 = vmatpush1.msra.mxu0 0.0
    %1083 = vmatprep.subr.mxu0 0.0
    %1084 = vmatpush1.msra.mxu0 0.0
    %1085 = vmatprep.subr.mxu0 0.0
    %1086 = vmatpush1.msra.mxu0 0.0
    %1087 = vmatprep.subr.mxu0 0.0
    %1088 = vmatpush1.msra.mxu0 0.0
    %1089 = vmatprep.subr.mxu0 0.0
    %1090 = vmatpush1.msra.mxu0 0.0
    %1091 = vmatprep.subr.mxu0 0.0
    %1092 = vmatpush1.msra.mxu0 0.0
    %1093 = vmatprep.subr.mxu0 0.0
    %1094 = vmatpush1.msra.mxu0 0.0
    %1095 = vmatprep.subr.mxu0 0.0
    %1096 = vmatpush1.msra.mxu0 0.0
    %1097 = vmatprep.subr.mxu0 0.0
    %1098 = vmatpush1.msra.mxu0 0.0
    %1099 = vmatprep.subr.mxu0 0.0
    %1100 = vmatpush1.msra.mxu0 0.0
    %1101 = vmatprep.subr.mxu0 0.0
    %1102 = vmatpush1.msra.mxu0 0.0
    %1103 = vmatprep.mubr.f32.mxu0 0.0
    %v1104 = vand.u32 %v623, 4294901760
    %1105 = vmatmul.mubr.f32.gmra.mrb[0].mxu0 %v1104
    %v1106 = vpop.f32.mrb[0].mxu0
    %v1107 = vadd.f32 %v1032, %v1106
    %v1108 = vpop.f32.mrb[0].mxu0
    %1109 = vdwg.mxu0
    %s1110 = sld [smem:[#allocation3]]
    %v1111 = vstv %s1110
    %v1112 = vadd.f32 %v1107, %v1111
    %s1113 = sld [smem:[#allocation2]]
    %v1114 = vstv %s1113
    %v1115 = vmul.f32 %v1114, %v23
    %v1117 = vrot.slane %v1115, 7
    %v1119 = vadd.f32 %v1112, %v1117
    %1120 = vst [vmem:[#allocation4] sm:$0x1] %v1119
    // Predicated region
    $region22: #{tpu_custom_call.1} parent=1 // pred_check
      _
    $region23: #{tpu_custom_call.1} parent=1 // pred_check_branch
      %1122 = sbr.rel (0) target = $region25
    $region24: #{tpu_custom_call.1} parent=1 // pred_region
      %s1124 = ssub.s32 16, 16
      %1125 = vsyncadd [#allocation5], %s1124
      %s1127 = sshll.u32 [#allocation4], 4
      %s1128 = int_to_ptr.vmem [resolvable:$true] %s1127
      %1130 = dma.vmem_to_hbm [thread:$0]  %s1128, 16, %s5, [#allocation5]
    $region25: #{tpu_custom_call.1} parent=1 // pred_fallthru
      _
    // Predicated region
    $region26: #{tpu_custom_call.1} parent=1 // pred_check
      _
    $region27: #{tpu_custom_call.1} parent=1 // pred_check_branch
      %1132 = sbr.rel (0) target = $region29
    $region28: #{tpu_custom_call.1} parent=1 // pred_region
      %1133 = dma.done [#allocation5], 16
    $region29: #{tpu_custom_call.1} parent=1 // pred_fallthru
      _
    %1134 = vsyncpa [#allocation5], 1

</llo_original>
